<compile_context>
chip_gen: v7x
topology: tpu7x:2x2x1
jax: 0.10.0
libtpu: 0.0.40
codegen_flags: <defaults>
</compile_context>

<pallas_src>
import functools

import jax
import jax.numpy as jnp
from jax.experimental import pallas as pl
from jax.experimental.pallas import tpu as pltpu

patch_size = 8  # module default


def _patches_kernel(x_ref, o_ref, *, C, k, P, W):
    # x_ref: (C, R, k*W) -- R patch-rows of the image; per channel, the k image
    #                       rows of each patch-row are flattened into the lane dim.
    # o_ref: (R, P*D)    -- the R corresponding lane-dense output rows, D = C*k*k.
    #
    # out[r, pj*D + c*k*k + kh*k + kw] = strip[c, r, kh*W + pj*k + kw]
    pieces = []
    for pj in range(P):
        for c in range(C):
            for kh in range(k):
                lo = kh * W + pj * k
                pieces.append(x_ref[c, :, lo:lo + k])      # (R, k) static slice load
    # One lane-dense store of the whole output block.
    o_ref[...] = jnp.concatenate(pieces, axis=-1)          # (R, P*D)


def _rows_per_step(P, C, k, W, itemsize):
    """Largest legal number of patch-rows per grid step that fits VMEM."""
    # Per patch-row: the input strip (C*k*W) plus the equally sized output slab,
    # each double-buffered by the pipeline.
    per_row = 2 * 2 * C * k * W * itemsize
    budget = 24 << 20  # conservative: comfortably inside v7x's 64 MiB physical VMEM
    # The output block has R in the second-to-last dim, so R must equal P or be
    # a multiple of 8 (and divide P) to satisfy the (8, 128) block constraint.
    legal = [r for r in range(P, 0, -1) if P % r == 0 and (r == P or r % 8 == 0)]
    for r in legal:
        if r * per_row <= budget:
            return r
    return legal[-1]


def patches_forward(x, patch_size):
    """Pallas equivalent of Patches(patch_size).forward(x) for NCHW x."""
    B, C, H, W = x.shape
    assert H == W, "Patches module requires square images"
    assert H % patch_size == 0, "image size must be divisible by patch_size"
    P = patch_size
    k = H // P          # kernel_size = stride in the reference module
    N = P * P           # number of patches
    D = C * k * k       # flattened patch dimension

    R = _rows_per_step(P, C, k, W, x.dtype.itemsize)

    # Pure views (no data movement): split H into (patch-row, in-patch-row) and
    # merge (in-patch-row, W) into one lane-dense trailing dim.
    x3 = x.reshape(B, C, P, k * W)

    kernel = functools.partial(_patches_kernel, C=C, k=k, P=P, W=W)

    # Rough double-buffered VMEM need for the chosen block (padded to (8, 128)).
    def _pad(n, m):
        return ((n + m - 1) // m) * m
    in_bytes = C * _pad(R, 8) * _pad(k * W, 128) * x.dtype.itemsize
    out_bytes = _pad(R, 8) * _pad(P * D, 128) * x.dtype.itemsize
    vmem_limit = int(min(max(2 * (in_bytes + out_bytes) + (8 << 20), 32 << 20),
                         48 << 20))

    out = pl.pallas_call(
        kernel,
        out_shape=jax.ShapeDtypeStruct((B, P, P * D), x.dtype),
        grid=(B, P // R),
        in_specs=[
            pl.BlockSpec(
                (None, C, R, k * W),              # squeeze the batch dim
                lambda b, r: (b, 0, r, 0),
            )
        ],
        out_specs=pl.BlockSpec(
            (None, R, P * D),                     # R lane-dense output rows
            lambda b, r: (b, r, 0),
        ),
        compiler_params=pltpu.CompilerParams(
            dimension_semantics=("parallel", "parallel"),
            vmem_limit_bytes=vmem_limit,
        ),
    )(x3)

    # (B, P, P*D) -> (B, P*P, D): pure view, memory order already matches
    # (b, patch_row, patch_col, patch_dim).
    return out.reshape(B, N, D)


def _ref_patches(x, patch_size):
    # Pure-JAX reference (== unfold-based image_extract_patches, (c, kh, kw) order).
    B, C, H, W = x.shape
    P = patch_size
    k = H // P
    y = x.reshape(B, C, P, k, P, k)
    y = jnp.transpose(y, (0, 2, 4, 1, 3, 5))   # (B, ph, pw, C, kh, kw)
    return y.reshape(B, P * P, C * k * k)


if __name__ == "__main__":
    key = jax.random.PRNGKey(0)
    # Small shapes: batch=2, channels=4, spatial=16 -> k = 16 // 8 = 2,
    # 64 patches of dim 4*2*2 = 16.
    x = jax.random.normal(key, (2, 4, 16, 16), dtype=jnp.float32)

    out = patches_forward(x, patch_size)
    out = jax.block_until_ready(out)

    ref = _ref_patches(x, patch_size)
    assert out.shape == (2, patch_size * patch_size, 4 * 2 * 2), out.shape
    assert jnp.allclose(out, ref), "Pallas patch extraction mismatch vs reference"

    print("KERNEL_OK")
</pallas_src>

<mosaic_0001>
module attributes {stable_mosaic.version = 11 : i64} {
  func.func @_patches_kernel(%arg0: i32, %arg1: i32, %arg2: memref<1x4x8x32xf32, #tpu.memory_space<vmem>>, %arg3: memref<1x8x128xf32, #tpu.memory_space<vmem>>) attributes {dimension_semantics = [#tpu.dimension_semantics<parallel>, #tpu.dimension_semantics<parallel>], iteration_bounds = array<i64: 2, 1>, scalar_prefetch = 0 : i64, scratch_operands = 0 : i64, tpu.core_type = #tpu.core_type<tc>, window_params = [{transform_indices = @transform_0, window_bounds = array<i64: 1, 4, 8, 32>}, {transform_indices = @transform_1, window_bounds = array<i64: 1, 8, 128>}]} {
    %c0 = arith.constant 0 : index
    %c0_0 = arith.constant 0 : index
    %c0_1 = arith.constant 0 : index
    %c0_2 = arith.constant 0 : index
    %0 = vector.load %arg2[%c0, %c0_0, %c0_1, %c0_2] : memref<1x4x8x32xf32, #tpu.memory_space<vmem>>, vector<1x1x8x2xf32>
    %1 = vector.shape_cast %0 : vector<1x1x8x2xf32> to vector<8x2xf32>
    %c0_3 = arith.constant 0 : index
    %c0_4 = arith.constant 0 : index
    %c0_5 = arith.constant 0 : index
    %c16 = arith.constant 16 : index
    %2 = vector.load %arg2[%c0_3, %c0_4, %c0_5, %c16] : memref<1x4x8x32xf32, #tpu.memory_space<vmem>>, vector<1x1x8x2xf32>
    %3 = vector.shape_cast %2 : vector<1x1x8x2xf32> to vector<8x2xf32>
    %c0_6 = arith.constant 0 : index
    %c1 = arith.constant 1 : index
    %c0_7 = arith.constant 0 : index
    %c0_8 = arith.constant 0 : index
    %4 = vector.load %arg2[%c0_6, %c1, %c0_7, %c0_8] : memref<1x4x8x32xf32, #tpu.memory_space<vmem>>, vector<1x1x8x2xf32>
    %5 = vector.shape_cast %4 : vector<1x1x8x2xf32> to vector<8x2xf32>
    %c0_9 = arith.constant 0 : index
    %c1_10 = arith.constant 1 : index
    %c0_11 = arith.constant 0 : index
    %c16_12 = arith.constant 16 : index
    %6 = vector.load %arg2[%c0_9, %c1_10, %c0_11, %c16_12] : memref<1x4x8x32xf32, #tpu.memory_space<vmem>>, vector<1x1x8x2xf32>
    %7 = vector.shape_cast %6 : vector<1x1x8x2xf32> to vector<8x2xf32>
    %c0_13 = arith.constant 0 : index
    %c2 = arith.constant 2 : index
    %c0_14 = arith.constant 0 : index
    %c0_15 = arith.constant 0 : index
    %8 = vector.load %arg2[%c0_13, %c2, %c0_14, %c0_15] : memref<1x4x8x32xf32, #tpu.memory_space<vmem>>, vector<1x1x8x2xf32>
    %9 = vector.shape_cast %8 : vector<1x1x8x2xf32> to vector<8x2xf32>
    %c0_16 = arith.constant 0 : index
    %c2_17 = arith.constant 2 : index
    %c0_18 = arith.constant 0 : index
    %c16_19 = arith.constant 16 : index
    %10 = vector.load %arg2[%c0_16, %c2_17, %c0_18, %c16_19] : memref<1x4x8x32xf32, #tpu.memory_space<vmem>>, vector<1x1x8x2xf32>
    %11 = vector.shape_cast %10 : vector<1x1x8x2xf32> to vector<8x2xf32>
    %c0_20 = arith.constant 0 : index
    %c3 = arith.constant 3 : index
    %c0_21 = arith.constant 0 : index
    %c0_22 = arith.constant 0 : index
    %12 = vector.load %arg2[%c0_20, %c3, %c0_21, %c0_22] : memref<1x4x8x32xf32, #tpu.memory_space<vmem>>, vector<1x1x8x2xf32>
    %13 = vector.shape_cast %12 : vector<1x1x8x2xf32> to vector<8x2xf32>
    %c0_23 = arith.constant 0 : index
    %c3_24 = arith.constant 3 : index
    %c0_25 = arith.constant 0 : index
    %c16_26 = arith.constant 16 : index
    %14 = vector.load %arg2[%c0_23, %c3_24, %c0_25, %c16_26] : memref<1x4x8x32xf32, #tpu.memory_space<vmem>>, vector<1x1x8x2xf32>
    %15 = vector.shape_cast %14 : vector<1x1x8x2xf32> to vector<8x2xf32>
    %c0_27 = arith.constant 0 : index
    %c0_28 = arith.constant 0 : index
    %c0_29 = arith.constant 0 : index
    %c2_30 = arith.constant 2 : index
    %16 = vector.load %arg2[%c0_27, %c0_28, %c0_29, %c2_30] : memref<1x4x8x32xf32, #tpu.memory_space<vmem>>, vector<1x1x8x2xf32>
    %17 = vector.shape_cast %16 : vector<1x1x8x2xf32> to vector<8x2xf32>
    %c0_31 = arith.constant 0 : index
    %c0_32 = arith.constant 0 : index
    %c0_33 = arith.constant 0 : index
    %c18 = arith.constant 18 : index
    %18 = vector.load %arg2[%c0_31, %c0_32, %c0_33, %c18] : memref<1x4x8x32xf32, #tpu.memory_space<vmem>>, vector<1x1x8x2xf32>
    %19 = vector.shape_cast %18 : vector<1x1x8x2xf32> to vector<8x2xf32>
    %c0_34 = arith.constant 0 : index
    %c1_35 = arith.constant 1 : index
    %c0_36 = arith.constant 0 : index
    %c2_37 = arith.constant 2 : index
    %20 = vector.load %arg2[%c0_34, %c1_35, %c0_36, %c2_37] : memref<1x4x8x32xf32, #tpu.memory_space<vmem>>, vector<1x1x8x2xf32>
    %21 = vector.shape_cast %20 : vector<1x1x8x2xf32> to vector<8x2xf32>
    %c0_38 = arith.constant 0 : index
    %c1_39 = arith.constant 1 : index
    %c0_40 = arith.constant 0 : index
    %c18_41 = arith.constant 18 : index
    %22 = vector.load %arg2[%c0_38, %c1_39, %c0_40, %c18_41] : memref<1x4x8x32xf32, #tpu.memory_space<vmem>>, vector<1x1x8x2xf32>
    %23 = vector.shape_cast %22 : vector<1x1x8x2xf32> to vector<8x2xf32>
    %c0_42 = arith.constant 0 : index
    %c2_43 = arith.constant 2 : index
    %c0_44 = arith.constant 0 : index
    %c2_45 = arith.constant 2 : index
    %24 = vector.load %arg2[%c0_42, %c2_43, %c0_44, %c2_45] : memref<1x4x8x32xf32, #tpu.memory_space<vmem>>, vector<1x1x8x2xf32>
    %25 = vector.shape_cast %24 : vector<1x1x8x2xf32> to vector<8x2xf32>
    %c0_46 = arith.constant 0 : index
    %c2_47 = arith.constant 2 : index
    %c0_48 = arith.constant 0 : index
    %c18_49 = arith.constant 18 : index
    %26 = vector.load %arg2[%c0_46, %c2_47, %c0_48, %c18_49] : memref<1x4x8x32xf32, #tpu.memory_space<vmem>>, vector<1x1x8x2xf32>
    %27 = vector.shape_cast %26 : vector<1x1x8x2xf32> to vector<8x2xf32>
    %c0_50 = arith.constant 0 : index
    %c3_51 = arith.constant 3 : index
    %c0_52 = arith.constant 0 : index
    %c2_53 = arith.constant 2 : index
    %28 = vector.load %arg2[%c0_50, %c3_51, %c0_52, %c2_53] : memref<1x4x8x32xf32, #tpu.memory_space<vmem>>, vector<1x1x8x2xf32>
    %29 = vector.shape_cast %28 : vector<1x1x8x2xf32> to vector<8x2xf32>
    %c0_54 = arith.constant 0 : index
    %c3_55 = arith.constant 3 : index
    %c0_56 = arith.constant 0 : index
    %c18_57 = arith.constant 18 : index
    %30 = vector.load %arg2[%c0_54, %c3_55, %c0_56, %c18_57] : memref<1x4x8x32xf32, #tpu.memory_space<vmem>>, vector<1x1x8x2xf32>
    %31 = vector.shape_cast %30 : vector<1x1x8x2xf32> to vector<8x2xf32>
    %c0_58 = arith.constant 0 : index
    %c0_59 = arith.constant 0 : index
    %c0_60 = arith.constant 0 : index
    %c4 = arith.constant 4 : index
    %32 = vector.load %arg2[%c0_58, %c0_59, %c0_60, %c4] : memref<1x4x8x32xf32, #tpu.memory_space<vmem>>, vector<1x1x8x2xf32>
    %33 = vector.shape_cast %32 : vector<1x1x8x2xf32> to vector<8x2xf32>
    %c0_61 = arith.constant 0 : index
    %c0_62 = arith.constant 0 : index
    %c0_63 = arith.constant 0 : index
    %c20 = arith.constant 20 : index
    %34 = vector.load %arg2[%c0_61, %c0_62, %c0_63, %c20] : memref<1x4x8x32xf32, #tpu.memory_space<vmem>>, vector<1x1x8x2xf32>
    %35 = vector.shape_cast %34 : vector<1x1x8x2xf32> to vector<8x2xf32>
    %c0_64 = arith.constant 0 : index
    %c1_65 = arith.constant 1 : index
    %c0_66 = arith.constant 0 : index
    %c4_67 = arith.constant 4 : index
    %36 = vector.load %arg2[%c0_64, %c1_65, %c0_66, %c4_67] : memref<1x4x8x32xf32, #tpu.memory_space<vmem>>, vector<1x1x8x2xf32>
    %37 = vector.shape_cast %36 : vector<1x1x8x2xf32> to vector<8x2xf32>
    %c0_68 = arith.constant 0 : index
    %c1_69 = arith.constant 1 : index
    %c0_70 = arith.constant 0 : index
    %c20_71 = arith.constant 20 : index
    %38 = vector.load %arg2[%c0_68, %c1_69, %c0_70, %c20_71] : memref<1x4x8x32xf32, #tpu.memory_space<vmem>>, vector<1x1x8x2xf32>
    %39 = vector.shape_cast %38 : vector<1x1x8x2xf32> to vector<8x2xf32>
    %c0_72 = arith.constant 0 : index
    %c2_73 = arith.constant 2 : index
    %c0_74 = arith.constant 0 : index
    %c4_75 = arith.constant 4 : index
    %40 = vector.load %arg2[%c0_72, %c2_73, %c0_74, %c4_75] : memref<1x4x8x32xf32, #tpu.memory_space<vmem>>, vector<1x1x8x2xf32>
    %41 = vector.shape_cast %40 : vector<1x1x8x2xf32> to vector<8x2xf32>
    %c0_76 = arith.constant 0 : index
    %c2_77 = arith.constant 2 : index
    %c0_78 = arith.constant 0 : index
    %c20_79 = arith.constant 20 : index
    %42 = vector.load %arg2[%c0_76, %c2_77, %c0_78, %c20_79] : memref<1x4x8x32xf32, #tpu.memory_space<vmem>>, vector<1x1x8x2xf32>
    %43 = vector.shape_cast %42 : vector<1x1x8x2xf32> to vector<8x2xf32>
    %c0_80 = arith.constant 0 : index
    %c3_81 = arith.constant 3 : index
    %c0_82 = arith.constant 0 : index
    %c4_83 = arith.constant 4 : index
    %44 = vector.load %arg2[%c0_80, %c3_81, %c0_82, %c4_83] : memref<1x4x8x32xf32, #tpu.memory_space<vmem>>, vector<1x1x8x2xf32>
    %45 = vector.shape_cast %44 : vector<1x1x8x2xf32> to vector<8x2xf32>
    %c0_84 = arith.constant 0 : index
    %c3_85 = arith.constant 3 : index
    %c0_86 = arith.constant 0 : index
    %c20_87 = arith.constant 20 : index
    %46 = vector.load %arg2[%c0_84, %c3_85, %c0_86, %c20_87] : memref<1x4x8x32xf32, #tpu.memory_space<vmem>>, vector<1x1x8x2xf32>
    %47 = vector.shape_cast %46 : vector<1x1x8x2xf32> to vector<8x2xf32>
    %c0_88 = arith.constant 0 : index
    %c0_89 = arith.constant 0 : index
    %c0_90 = arith.constant 0 : index
    %c6 = arith.constant 6 : index
    %48 = vector.load %arg2[%c0_88, %c0_89, %c0_90, %c6] : memref<1x4x8x32xf32, #tpu.memory_space<vmem>>, vector<1x1x8x2xf32>
    %49 = vector.shape_cast %48 : vector<1x1x8x2xf32> to vector<8x2xf32>
    %c0_91 = arith.constant 0 : index
    %c0_92 = arith.constant 0 : index
    %c0_93 = arith.constant 0 : index
    %c22 = arith.constant 22 : index
    %50 = vector.load %arg2[%c0_91, %c0_92, %c0_93, %c22] : memref<1x4x8x32xf32, #tpu.memory_space<vmem>>, vector<1x1x8x2xf32>
    %51 = vector.shape_cast %50 : vector<1x1x8x2xf32> to vector<8x2xf32>
    %c0_94 = arith.constant 0 : index
    %c1_95 = arith.constant 1 : index
    %c0_96 = arith.constant 0 : index
    %c6_97 = arith.constant 6 : index
    %52 = vector.load %arg2[%c0_94, %c1_95, %c0_96, %c6_97] : memref<1x4x8x32xf32, #tpu.memory_space<vmem>>, vector<1x1x8x2xf32>
    %53 = vector.shape_cast %52 : vector<1x1x8x2xf32> to vector<8x2xf32>
    %c0_98 = arith.constant 0 : index
    %c1_99 = arith.constant 1 : index
    %c0_100 = arith.constant 0 : index
    %c22_101 = arith.constant 22 : index
    %54 = vector.load %arg2[%c0_98, %c1_99, %c0_100, %c22_101] : memref<1x4x8x32xf32, #tpu.memory_space<vmem>>, vector<1x1x8x2xf32>
    %55 = vector.shape_cast %54 : vector<1x1x8x2xf32> to vector<8x2xf32>
    %c0_102 = arith.constant 0 : index
    %c2_103 = arith.constant 2 : index
    %c0_104 = arith.constant 0 : index
    %c6_105 = arith.constant 6 : index
    %56 = vector.load %arg2[%c0_102, %c2_103, %c0_104, %c6_105] : memref<1x4x8x32xf32, #tpu.memory_space<vmem>>, vector<1x1x8x2xf32>
    %57 = vector.shape_cast %56 : vector<1x1x8x2xf32> to vector<8x2xf32>
    %c0_106 = arith.constant 0 : index
    %c2_107 = arith.constant 2 : index
    %c0_108 = arith.constant 0 : index
    %c22_109 = arith.constant 22 : index
    %58 = vector.load %arg2[%c0_106, %c2_107, %c0_108, %c22_109] : memref<1x4x8x32xf32, #tpu.memory_space<vmem>>, vector<1x1x8x2xf32>
    %59 = vector.shape_cast %58 : vector<1x1x8x2xf32> to vector<8x2xf32>
    %c0_110 = arith.constant 0 : index
    %c3_111 = arith.constant 3 : index
    %c0_112 = arith.constant 0 : index
    %c6_113 = arith.constant 6 : index
    %60 = vector.load %arg2[%c0_110, %c3_111, %c0_112, %c6_113] : memref<1x4x8x32xf32, #tpu.memory_space<vmem>>, vector<1x1x8x2xf32>
    %61 = vector.shape_cast %60 : vector<1x1x8x2xf32> to vector<8x2xf32>
    %c0_114 = arith.constant 0 : index
    %c3_115 = arith.constant 3 : index
    %c0_116 = arith.constant 0 : index
    %c22_117 = arith.constant 22 : index
    %62 = vector.load %arg2[%c0_114, %c3_115, %c0_116, %c22_117] : memref<1x4x8x32xf32, #tpu.memory_space<vmem>>, vector<1x1x8x2xf32>
    %63 = vector.shape_cast %62 : vector<1x1x8x2xf32> to vector<8x2xf32>
    %c0_118 = arith.constant 0 : index
    %c0_119 = arith.constant 0 : index
    %c0_120 = arith.constant 0 : index
    %c8 = arith.constant 8 : index
    %64 = vector.load %arg2[%c0_118, %c0_119, %c0_120, %c8] : memref<1x4x8x32xf32, #tpu.memory_space<vmem>>, vector<1x1x8x2xf32>
    %65 = vector.shape_cast %64 : vector<1x1x8x2xf32> to vector<8x2xf32>
    %c0_121 = arith.constant 0 : index
    %c0_122 = arith.constant 0 : index
    %c0_123 = arith.constant 0 : index
    %c24 = arith.constant 24 : index
    %66 = vector.load %arg2[%c0_121, %c0_122, %c0_123, %c24] : memref<1x4x8x32xf32, #tpu.memory_space<vmem>>, vector<1x1x8x2xf32>
    %67 = vector.shape_cast %66 : vector<1x1x8x2xf32> to vector<8x2xf32>
    %c0_124 = arith.constant 0 : index
    %c1_125 = arith.constant 1 : index
    %c0_126 = arith.constant 0 : index
    %c8_127 = arith.constant 8 : index
    %68 = vector.load %arg2[%c0_124, %c1_125, %c0_126, %c8_127] : memref<1x4x8x32xf32, #tpu.memory_space<vmem>>, vector<1x1x8x2xf32>
    %69 = vector.shape_cast %68 : vector<1x1x8x2xf32> to vector<8x2xf32>
    %c0_128 = arith.constant 0 : index
    %c1_129 = arith.constant 1 : index
    %c0_130 = arith.constant 0 : index
    %c24_131 = arith.constant 24 : index
    %70 = vector.load %arg2[%c0_128, %c1_129, %c0_130, %c24_131] : memref<1x4x8x32xf32, #tpu.memory_space<vmem>>, vector<1x1x8x2xf32>
    %71 = vector.shape_cast %70 : vector<1x1x8x2xf32> to vector<8x2xf32>
    %c0_132 = arith.constant 0 : index
    %c2_133 = arith.constant 2 : index
    %c0_134 = arith.constant 0 : index
    %c8_135 = arith.constant 8 : index
    %72 = vector.load %arg2[%c0_132, %c2_133, %c0_134, %c8_135] : memref<1x4x8x32xf32, #tpu.memory_space<vmem>>, vector<1x1x8x2xf32>
    %73 = vector.shape_cast %72 : vector<1x1x8x2xf32> to vector<8x2xf32>
    %c0_136 = arith.constant 0 : index
    %c2_137 = arith.constant 2 : index
    %c0_138 = arith.constant 0 : index
    %c24_139 = arith.constant 24 : index
    %74 = vector.load %arg2[%c0_136, %c2_137, %c0_138, %c24_139] : memref<1x4x8x32xf32, #tpu.memory_space<vmem>>, vector<1x1x8x2xf32>
    %75 = vector.shape_cast %74 : vector<1x1x8x2xf32> to vector<8x2xf32>
    %c0_140 = arith.constant 0 : index
    %c3_141 = arith.constant 3 : index
    %c0_142 = arith.constant 0 : index
    %c8_143 = arith.constant 8 : index
    %76 = vector.load %arg2[%c0_140, %c3_141, %c0_142, %c8_143] : memref<1x4x8x32xf32, #tpu.memory_space<vmem>>, vector<1x1x8x2xf32>
    %77 = vector.shape_cast %76 : vector<1x1x8x2xf32> to vector<8x2xf32>
    %c0_144 = arith.constant 0 : index
    %c3_145 = arith.constant 3 : index
    %c0_146 = arith.constant 0 : index
    %c24_147 = arith.constant 24 : index
    %78 = vector.load %arg2[%c0_144, %c3_145, %c0_146, %c24_147] : memref<1x4x8x32xf32, #tpu.memory_space<vmem>>, vector<1x1x8x2xf32>
    %79 = vector.shape_cast %78 : vector<1x1x8x2xf32> to vector<8x2xf32>
    %c0_148 = arith.constant 0 : index
    %c0_149 = arith.constant 0 : index
    %c0_150 = arith.constant 0 : index
    %c10 = arith.constant 10 : index
    %80 = vector.load %arg2[%c0_148, %c0_149, %c0_150, %c10] : memref<1x4x8x32xf32, #tpu.memory_space<vmem>>, vector<1x1x8x2xf32>
    %81 = vector.shape_cast %80 : vector<1x1x8x2xf32> to vector<8x2xf32>
    %c0_151 = arith.constant 0 : index
    %c0_152 = arith.constant 0 : index
    %c0_153 = arith.constant 0 : index
    %c26 = arith.constant 26 : index
    %82 = vector.load %arg2[%c0_151, %c0_152, %c0_153, %c26] : memref<1x4x8x32xf32, #tpu.memory_space<vmem>>, vector<1x1x8x2xf32>
    %83 = vector.shape_cast %82 : vector<1x1x8x2xf32> to vector<8x2xf32>
    %c0_154 = arith.constant 0 : index
    %c1_155 = arith.constant 1 : index
    %c0_156 = arith.constant 0 : index
    %c10_157 = arith.constant 10 : index
    %84 = vector.load %arg2[%c0_154, %c1_155, %c0_156, %c10_157] : memref<1x4x8x32xf32, #tpu.memory_space<vmem>>, vector<1x1x8x2xf32>
    %85 = vector.shape_cast %84 : vector<1x1x8x2xf32> to vector<8x2xf32>
    %c0_158 = arith.constant 0 : index
    %c1_159 = arith.constant 1 : index
    %c0_160 = arith.constant 0 : index
    %c26_161 = arith.constant 26 : index
    %86 = vector.load %arg2[%c0_158, %c1_159, %c0_160, %c26_161] : memref<1x4x8x32xf32, #tpu.memory_space<vmem>>, vector<1x1x8x2xf32>
    %87 = vector.shape_cast %86 : vector<1x1x8x2xf32> to vector<8x2xf32>
    %c0_162 = arith.constant 0 : index
    %c2_163 = arith.constant 2 : index
    %c0_164 = arith.constant 0 : index
    %c10_165 = arith.constant 10 : index
    %88 = vector.load %arg2[%c0_162, %c2_163, %c0_164, %c10_165] : memref<1x4x8x32xf32, #tpu.memory_space<vmem>>, vector<1x1x8x2xf32>
    %89 = vector.shape_cast %88 : vector<1x1x8x2xf32> to vector<8x2xf32>
    %c0_166 = arith.constant 0 : index
    %c2_167 = arith.constant 2 : index
    %c0_168 = arith.constant 0 : index
    %c26_169 = arith.constant 26 : index
    %90 = vector.load %arg2[%c0_166, %c2_167, %c0_168, %c26_169] : memref<1x4x8x32xf32, #tpu.memory_space<vmem>>, vector<1x1x8x2xf32>
    %91 = vector.shape_cast %90 : vector<1x1x8x2xf32> to vector<8x2xf32>
    %c0_170 = arith.constant 0 : index
    %c3_171 = arith.constant 3 : index
    %c0_172 = arith.constant 0 : index
    %c10_173 = arith.constant 10 : index
    %92 = vector.load %arg2[%c0_170, %c3_171, %c0_172, %c10_173] : memref<1x4x8x32xf32, #tpu.memory_space<vmem>>, vector<1x1x8x2xf32>
    %93 = vector.shape_cast %92 : vector<1x1x8x2xf32> to vector<8x2xf32>
    %c0_174 = arith.constant 0 : index
    %c3_175 = arith.constant 3 : index
    %c0_176 = arith.constant 0 : index
    %c26_177 = arith.constant 26 : index
    %94 = vector.load %arg2[%c0_174, %c3_175, %c0_176, %c26_177] : memref<1x4x8x32xf32, #tpu.memory_space<vmem>>, vector<1x1x8x2xf32>
    %95 = vector.shape_cast %94 : vector<1x1x8x2xf32> to vector<8x2xf32>
    %c0_178 = arith.constant 0 : index
    %c0_179 = arith.constant 0 : index
    %c0_180 = arith.constant 0 : index
    %c12 = arith.constant 12 : index
    %96 = vector.load %arg2[%c0_178, %c0_179, %c0_180, %c12] : memref<1x4x8x32xf32, #tpu.memory_space<vmem>>, vector<1x1x8x2xf32>
    %97 = vector.shape_cast %96 : vector<1x1x8x2xf32> to vector<8x2xf32>
    %c0_181 = arith.constant 0 : index
    %c0_182 = arith.constant 0 : index
    %c0_183 = arith.constant 0 : index
    %c28 = arith.constant 28 : index
    %98 = vector.load %arg2[%c0_181, %c0_182, %c0_183, %c28] : memref<1x4x8x32xf32, #tpu.memory_space<vmem>>, vector<1x1x8x2xf32>
    %99 = vector.shape_cast %98 : vector<1x1x8x2xf32> to vector<8x2xf32>
    %c0_184 = arith.constant 0 : index
    %c1_185 = arith.constant 1 : index
    %c0_186 = arith.constant 0 : index
    %c12_187 = arith.constant 12 : index
    %100 = vector.load %arg2[%c0_184, %c1_185, %c0_186, %c12_187] : memref<1x4x8x32xf32, #tpu.memory_space<vmem>>, vector<1x1x8x2xf32>
    %101 = vector.shape_cast %100 : vector<1x1x8x2xf32> to vector<8x2xf32>
    %c0_188 = arith.constant 0 : index
    %c1_189 = arith.constant 1 : index
    %c0_190 = arith.constant 0 : index
    %c28_191 = arith.constant 28 : index
    %102 = vector.load %arg2[%c0_188, %c1_189, %c0_190, %c28_191] : memref<1x4x8x32xf32, #tpu.memory_space<vmem>>, vector<1x1x8x2xf32>
    %103 = vector.shape_cast %102 : vector<1x1x8x2xf32> to vector<8x2xf32>
    %c0_192 = arith.constant 0 : index
    %c2_193 = arith.constant 2 : index
    %c0_194 = arith.constant 0 : index
    %c12_195 = arith.constant 12 : index
    %104 = vector.load %arg2[%c0_192, %c2_193, %c0_194, %c12_195] : memref<1x4x8x32xf32, #tpu.memory_space<vmem>>, vector<1x1x8x2xf32>
    %105 = vector.shape_cast %104 : vector<1x1x8x2xf32> to vector<8x2xf32>
    %c0_196 = arith.constant 0 : index
    %c2_197 = arith.constant 2 : index
    %c0_198 = arith.constant 0 : index
    %c28_199 = arith.constant 28 : index
    %106 = vector.load %arg2[%c0_196, %c2_197, %c0_198, %c28_199] : memref<1x4x8x32xf32, #tpu.memory_space<vmem>>, vector<1x1x8x2xf32>
    %107 = vector.shape_cast %106 : vector<1x1x8x2xf32> to vector<8x2xf32>
    %c0_200 = arith.constant 0 : index
    %c3_201 = arith.constant 3 : index
    %c0_202 = arith.constant 0 : index
    %c12_203 = arith.constant 12 : index
    %108 = vector.load %arg2[%c0_200, %c3_201, %c0_202, %c12_203] : memref<1x4x8x32xf32, #tpu.memory_space<vmem>>, vector<1x1x8x2xf32>
    %109 = vector.shape_cast %108 : vector<1x1x8x2xf32> to vector<8x2xf32>
    %c0_204 = arith.constant 0 : index
    %c3_205 = arith.constant 3 : index
    %c0_206 = arith.constant 0 : index
    %c28_207 = arith.constant 28 : index
    %110 = vector.load %arg2[%c0_204, %c3_205, %c0_206, %c28_207] : memref<1x4x8x32xf32, #tpu.memory_space<vmem>>, vector<1x1x8x2xf32>
    %111 = vector.shape_cast %110 : vector<1x1x8x2xf32> to vector<8x2xf32>
    %c0_208 = arith.constant 0 : index
    %c0_209 = arith.constant 0 : index
    %c0_210 = arith.constant 0 : index
    %c14 = arith.constant 14 : index
    %112 = vector.load %arg2[%c0_208, %c0_209, %c0_210, %c14] : memref<1x4x8x32xf32, #tpu.memory_space<vmem>>, vector<1x1x8x2xf32>
    %113 = vector.shape_cast %112 : vector<1x1x8x2xf32> to vector<8x2xf32>
    %c0_211 = arith.constant 0 : index
    %c0_212 = arith.constant 0 : index
    %c0_213 = arith.constant 0 : index
    %c30 = arith.constant 30 : index
    %114 = vector.load %arg2[%c0_211, %c0_212, %c0_213, %c30] : memref<1x4x8x32xf32, #tpu.memory_space<vmem>>, vector<1x1x8x2xf32>
    %115 = vector.shape_cast %114 : vector<1x1x8x2xf32> to vector<8x2xf32>
    %c0_214 = arith.constant 0 : index
    %c1_215 = arith.constant 1 : index
    %c0_216 = arith.constant 0 : index
    %c14_217 = arith.constant 14 : index
    %116 = vector.load %arg2[%c0_214, %c1_215, %c0_216, %c14_217] : memref<1x4x8x32xf32, #tpu.memory_space<vmem>>, vector<1x1x8x2xf32>
    %117 = vector.shape_cast %116 : vector<1x1x8x2xf32> to vector<8x2xf32>
    %c0_218 = arith.constant 0 : index
    %c1_219 = arith.constant 1 : index
    %c0_220 = arith.constant 0 : index
    %c30_221 = arith.constant 30 : index
    %118 = vector.load %arg2[%c0_218, %c1_219, %c0_220, %c30_221] : memref<1x4x8x32xf32, #tpu.memory_space<vmem>>, vector<1x1x8x2xf32>
    %119 = vector.shape_cast %118 : vector<1x1x8x2xf32> to vector<8x2xf32>
    %c0_222 = arith.constant 0 : index
    %c2_223 = arith.constant 2 : index
    %c0_224 = arith.constant 0 : index
    %c14_225 = arith.constant 14 : index
    %120 = vector.load %arg2[%c0_222, %c2_223, %c0_224, %c14_225] : memref<1x4x8x32xf32, #tpu.memory_space<vmem>>, vector<1x1x8x2xf32>
    %121 = vector.shape_cast %120 : vector<1x1x8x2xf32> to vector<8x2xf32>
    %c0_226 = arith.constant 0 : index
    %c2_227 = arith.constant 2 : index
    %c0_228 = arith.constant 0 : index
    %c30_229 = arith.constant 30 : index
    %122 = vector.load %arg2[%c0_226, %c2_227, %c0_228, %c30_229] : memref<1x4x8x32xf32, #tpu.memory_space<vmem>>, vector<1x1x8x2xf32>
    %123 = vector.shape_cast %122 : vector<1x1x8x2xf32> to vector<8x2xf32>
    %c0_230 = arith.constant 0 : index
    %c3_231 = arith.constant 3 : index
    %c0_232 = arith.constant 0 : index
    %c14_233 = arith.constant 14 : index
    %124 = vector.load %arg2[%c0_230, %c3_231, %c0_232, %c14_233] : memref<1x4x8x32xf32, #tpu.memory_space<vmem>>, vector<1x1x8x2xf32>
    %125 = vector.shape_cast %124 : vector<1x1x8x2xf32> to vector<8x2xf32>
    %c0_234 = arith.constant 0 : index
    %c3_235 = arith.constant 3 : index
    %c0_236 = arith.constant 0 : index
    %c30_237 = arith.constant 30 : index
    %126 = vector.load %arg2[%c0_234, %c3_235, %c0_236, %c30_237] : memref<1x4x8x32xf32, #tpu.memory_space<vmem>>, vector<1x1x8x2xf32>
    %127 = vector.shape_cast %126 : vector<1x1x8x2xf32> to vector<8x2xf32>
    %128 = tpu.concatenate %1, %3, %5, %7, %9, %11, %13, %15, %17, %19, %21, %23, %25, %27, %29, %31 in 1 : vector<8x2xf32>, vector<8x2xf32>, vector<8x2xf32>, vector<8x2xf32>, vector<8x2xf32>, vector<8x2xf32>, vector<8x2xf32>, vector<8x2xf32>, vector<8x2xf32>, vector<8x2xf32>, vector<8x2xf32>, vector<8x2xf32>, vector<8x2xf32>, vector<8x2xf32>, vector<8x2xf32>, vector<8x2xf32> -> vector<8x32xf32>
    %129 = tpu.concatenate %33, %35, %37, %39, %41, %43, %45, %47, %49, %51, %53, %55, %57, %59, %61, %63 in 1 : vector<8x2xf32>, vector<8x2xf32>, vector<8x2xf32>, vector<8x2xf32>, vector<8x2xf32>, vector<8x2xf32>, vector<8x2xf32>, vector<8x2xf32>, vector<8x2xf32>, vector<8x2xf32>, vector<8x2xf32>, vector<8x2xf32>, vector<8x2xf32>, vector<8x2xf32>, vector<8x2xf32>, vector<8x2xf32> -> vector<8x32xf32>
    %130 = tpu.concatenate %65, %67, %69, %71, %73, %75, %77, %79, %81, %83, %85, %87, %89, %91, %93, %95 in 1 : vector<8x2xf32>, vector<8x2xf32>, vector<8x2xf32>, vector<8x2xf32>, vector<8x2xf32>, vector<8x2xf32>, vector<8x2xf32>, vector<8x2xf32>, vector<8x2xf32>, vector<8x2xf32>, vector<8x2xf32>, vector<8x2xf32>, vector<8x2xf32>, vector<8x2xf32>, vector<8x2xf32>, vector<8x2xf32> -> vector<8x32xf32>
    %131 = tpu.concatenate %97, %99, %101, %103, %105, %107, %109, %111, %113, %115, %117, %119, %121, %123, %125, %127 in 1 : vector<8x2xf32>, vector<8x2xf32>, vector<8x2xf32>, vector<8x2xf32>, vector<8x2xf32>, vector<8x2xf32>, vector<8x2xf32>, vector<8x2xf32>, vector<8x2xf32>, vector<8x2xf32>, vector<8x2xf32>, vector<8x2xf32>, vector<8x2xf32>, vector<8x2xf32>, vector<8x2xf32>, vector<8x2xf32> -> vector<8x32xf32>
    %132 = tpu.concatenate %128, %129, %130, %131 in 1 : vector<8x32xf32>, vector<8x32xf32>, vector<8x32xf32>, vector<8x32xf32> -> vector<8x128xf32>
    %c0_238 = arith.constant 0 : index
    %c0_239 = arith.constant 0 : index
    %c0_240 = arith.constant 0 : index
    %133 = vector.load %arg3[%c0_238, %c0_239, %c0_240] : memref<1x8x128xf32, #tpu.memory_space<vmem>>, vector<1x8x128xf32>
    %134 = vector.shape_cast %133 : vector<1x8x128xf32> to vector<8x128xf32>
    %135 = vector.shape_cast %132 : vector<8x128xf32> to vector<1x8x128xf32>
    tpu.vector_store %arg3[%c0_238, %c0_239, %c0_240], %135 {strides = array<i32>} : memref<1x8x128xf32, #tpu.memory_space<vmem>>, vector<1x8x128xf32>,
    return
  }
  func.func @transform_0(%arg0: i32, %arg1: i32) -> (i32, i32, i32, i32) {
    %c0_i32 = arith.constant 0 : i32
    %c0_i32_0 = arith.constant 0 : i32
    %c0_i32_1 = arith.constant 0 : i32
    return %arg0, %c0_i32, %arg1, %c0_i32_0 : i32, i32, i32, i32
  }
  func.func @transform_1(%arg0: i32, %arg1: i32) -> (i32, i32, i32) {
    %c0_i32 = arith.constant 0 : i32
    %c0_i32_0 = arith.constant 0 : i32
    return %arg0, %arg1, %c0_i32 : i32, i32, i32
  }
}

</mosaic_0001>

<llo_original>
// kernel: tpu_custom_call.1
$region0: #{tpu_custom_call.1}
  #allocation0 [shape = 'u32[]', space=smem, size = 0x4, offset = 0x4, fixed_abs, tag = 'smem constant byte address 0x4 - core index']
  #allocation1 [shape = 'u32[144,128]{1,0:T(1,128)}', space=vmem, size = 0x12000, scoped, tag = 'internal scratch']
  %s0 = inlined_call_operand.hbm [shape: f32[2,4,8,32], index: 0, kind: input, shape index: {}]
  %s1 = inlined_call_operand.hbm [shape: f32[2,8,128], index: 1, kind: output, shape index: {}]
  %s2 = sld [smem:[#allocation0]]
  $region41: #{tpu_custom_call.1} parent=0
    _
  %s4 = ssub.s32 1, %s2
  %s5 = scalar_select 0, %s4, %s2
  $region1: #{tpu_custom_call.1} parent=0
    #allocation2 [shape = 'u8[32768]{0}', space=vmem, size = 0x8000, scoped, tag = 'input window, operand 0']
    #allocation3 [shape = 's32[2]{0}', space=sflag, size = 0x8, scoped, tag = 'scoped memory for tpu_custom_call.1']
    #allocation4 [shape = 's32[2]{0}', space=sflag, size = 0x8, scoped, tag = 'scoped memory for tpu_custom_call.1']
    #allocation5 [shape = 'u8[8192]{0}', space=vmem, size = 0x2000, scoped, tag = 'output window, operand 0']
    %6 = vsyncpa [#allocation3], 0
    %s7 = scalar_lea.sflag [#allocation3], 1
    %8 = vsyncpa %s7, 0
    %9 = vsyncpa [#allocation4], 0
    %s10 = scalar_lea.sflag [#allocation4], 1
    %11 = vsyncpa %s10, 0
    loop: start=0, step=1, limit=4
    $region2: #{tpu_custom_call.1} parent=1 // loop_pre_header
      _
    $region3: #{tpu_custom_call.1} parent=1 // loop_header
      %s13 = sphi 0, %s17
      %p14 = scmp.ge.s32.totalorder %s13, 4
      %s20 = sphi 0, %s32
      %s21 = sphi 0, %s28
      %s22 = sphi 0, %s20
      %s23 = sphi 0, %s21
      %s24 = sphi 0, %s22
      %s25 = sphi 0, %s23
      %s37 = sphi 0, %s39
      %s40 = sphi 0, %s37
      %s41 = sphi 0, %s40
      %s57 = sphi 0, %s41
      %s65 = sphi 0, %s67
      %s68 = sphi 0, %s65
      %s69 = sphi 0, %s68
      %s85 = sphi 0, %s69
    $region4: #{tpu_custom_call.1} parent=1 // loop_header_branch
      %16 = sbr.rel (%p14) target = $region8
    $region5: #{tpu_custom_call.1} parent=1 // loop_body
      %s18 = ssub.s32 %s13, 1
      %s19 = ssub.s32 %s13, 2
      %s26 = sadd.s32 1, %s21
      %p27 = scmp.ge.s32.totalorder %s26, 1
      %s28 = scalar_select %p27, 0, %s26
      %s29 = sadd.s32 1, %s20
      %s30 = scalar_select %p27, %s29, %s20
      %p31 = scmp.ge.s32.totalorder %s30, 2
      %s32 = scalar_select %p31, 0, %s30
      %s33 = ssub.s32 %s20, %s32
      %s34 = ssub.s32 %s21, %s28
      %s35 = sor.u32 %s33, %s34
      %p36 = scmp.eq.s32.totalorder %s35, 0
      %s38 = sadd.s32 %s37, 1
      %s39 = scalar_select %p36, %s37, %s38
      %p42 = pneg %p36
      %p43 = scmp.eq.s32.totalorder %s13, 1
      %p44 = por %p42, %p43
      %p45 = scmp.ne.s32.totalorder %s37, %s40
      %p46 = scmp.eq.s32.totalorder %s13, 0
      %p47 = por %p45, %p46
      %p48 = scmp.ne.s32.totalorder %s37, %s40
      %p49 = scmp.eq.s32.totalorder %s18, 1
      %p50 = por %p48, %p49
      %p51 = scmp.ne.s32.totalorder %s40, %s41
      %p52 = scmp.eq.s32.totalorder %s18, 0
      %p53 = por %p51, %p52
      %p54 = scmp.ne.s32.totalorder %s40, %s41
      %p55 = scmp.eq.s32.totalorder %s19, 1
      %p56 = por %p54, %p55
      %p58 = scmp.ne.s32.totalorder %s41, %s57
      %p59 = scmp.eq.s32.totalorder %s19, 0
      %p60 = por %p58, %p59
      %s61 = ssub.s32 %s20, %s32
      %s62 = ssub.s32 %s21, %s28
      %s63 = sor.u32 %s61, %s62
      %p64 = scmp.eq.s32.totalorder %s63, 0
      %s66 = sadd.s32 %s65, 1
      %s67 = scalar_select %p64, %s65, %s66
      %p70 = pneg %p64
      %p71 = scmp.eq.s32.totalorder %s13, 1
      %p72 = por %p70, %p71
      %p73 = scmp.ne.s32.totalorder %s65, %s68
      %p74 = scmp.eq.s32.totalorder %s13, 0
      %p75 = por %p73, %p74
      %p76 = scmp.ne.s32.totalorder %s65, %s68
      %p77 = scmp.eq.s32.totalorder %s18, 1
      %p78 = por %p76, %p77
      %p79 = scmp.ne.s32.totalorder %s68, %s69
      %p80 = scmp.eq.s32.totalorder %s18, 0
      %p81 = por %p79, %p80
      %p82 = scmp.ne.s32.totalorder %s68, %s69
      %p83 = scmp.eq.s32.totalorder %s19, 1
      %p84 = por %p82, %p83
      %p86 = scmp.ne.s32.totalorder %s69, %s85
      %p87 = scmp.eq.s32.totalorder %s19, 0
      %p88 = por %p86, %p87
      %p89 = scmp.le.s32.totalorder 1, %s13
      %p90 = scmp.lt.s32.totalorder %s13, 3
      %p91 = pnand %p89, %p90
      %p92 = pneg %p91
      // Predicated region
      $region9: #{tpu_custom_call.1} parent=5 // pred_check
        _
      $region10: #{tpu_custom_call.1} parent=5 // pred_check_branch
        %94 = sbr.rel (%p91) target = $region12
      $region11: #{tpu_custom_call.1} parent=5 // pred_region
        %s95 = ssub.s32 %s13, 1
      $region12: #{tpu_custom_call.1} parent=5 // pred_fallthru
        _
      %p96 = scmp.lt.s32.totalorder %s13, 2
      // Predicated region
      $region13: #{tpu_custom_call.1} parent=5 // pred_check
        %p97 = pneg %p96
      $region14: #{tpu_custom_call.1} parent=5 // pred_check_branch
        %99 = sbr.rel (%p97) target = $region16
      $region15: #{tpu_custom_call.1} parent=5 // pred_region
        // Predicated region
        $region17: #{tpu_custom_call.1} parent=15 // pred_check
          %p100 = pneg %p47
        $region18: #{tpu_custom_call.1} parent=15 // pred_check_branch
          %102 = sbr.rel (%p100) target = $region20
        $region19: #{tpu_custom_call.1} parent=15 // pred_region
          %s103 = sand.u32 %s37, 1
          %s104 = scalar_lea.sflag [#allocation3], %s103
          %s105 = sand.u32 %s37, 1
          %s106 = smul.addr %s105, 32
          %s107 = scalar_lea.vmem [#allocation2], %s106
          %s109 = ssub.s32 512, 512
          %110 = vsyncadd %s104, %s109
          %s111 = smul.addr %s20, 4
          %s112 = sadd.s32 %s21, %s111
          %s113 = smul.addr %s112, 128
          %s114 = scalar_lea.hbm %s0, %s113
          %s115 = sshll.u32 %s107, 4
          %s116 = int_to_ptr.vmem [resolvable:$true] %s115
          %121 = dma.hbm_to_vmem [thread:$0]  %s114, 512, %s116, %s104, 128, 128, 8
        $region20: #{tpu_custom_call.1} parent=15 // pred_fallthru
          _
      $region16: #{tpu_custom_call.1} parent=5 // pred_fallthru
        _
      %p122 = scmp.le.s32.totalorder 1, %s13
      %p123 = scmp.lt.s32.totalorder %s13, 3
      %p124 = pnand %p122, %p123
      %p125 = pneg %p124
      // Predicated region
      $region21: #{tpu_custom_call.1} parent=5 // pred_check
        _
      $region22: #{tpu_custom_call.1} parent=5 // pred_check_branch
        %127 = sbr.rel (%p124) target = $region24
      $region23: #{tpu_custom_call.1} parent=5 // pred_region
        %s128 = ssub.s32 %s13, 1
        %s129 = sand.u32 %s40, 1
        %s130 = scalar_lea.sflag [#allocation3], %s129
        %s131 = sand.u32 %s40, 1
        %s132 = smul.addr %s131, 32
        %s133 = scalar_lea.vmem [#allocation2], %s132
        // Predicated region
        $region25: #{tpu_custom_call.1} parent=23 // pred_check
          %p134 = pneg %p53
        $region26: #{tpu_custom_call.1} parent=23 // pred_check_branch
          %136 = sbr.rel (%p134) target = $region28
        $region27: #{tpu_custom_call.1} parent=23 // pred_region
          %137 = dma.done %s130, 512
        $region28: #{tpu_custom_call.1} parent=23 // pred_fallthru
          _
        %s138 = sand.u32 %s40, 1
        %s139 = scalar_lea.sflag [#allocation3], %s138
        %s140 = sand.u32 %s40, 1
        %s141 = smul.addr %s140, 32
        %s142 = scalar_lea.vmem [#allocation2], %s141
        %p143 = pneg %p53
        %p144 = pneg %p50
        %p145 = pneg %p81
        %p146 = pneg %p78
        %s147 = sand.u32 %s68, 1
        %s148 = scalar_lea.sflag [#allocation4], %s147
        %s149 = sand.u32 %s68, 1
        %s150 = smul.addr %s149, 8
        %s151 = scalar_lea.vmem [#allocation5], %s150
        %v152 = vld [vmem:[%s133] sm:$0xff]
        %s153 = scalar_lea.vmem %s133, 8 [#allocation2]
        %v154 = vld [vmem:[%s153] sm:$0xff]
        %s155 = scalar_lea.vmem %s133, 16 [#allocation2]
        %v156 = vld [vmem:[%s155] sm:$0xff]
        %s157 = scalar_lea.vmem %s133, 24 [#allocation2]
        %v158 = vld [vmem:[%s157] sm:$0xff]
        %160 = vrot.lane.b32.xlu0 %v152, 114
        %v161 = vpop.permute.xlu0 %160
        %164 = vrot.lane.b32.xlu0 %v154, 4
        %v165 = vpop.permute.xlu0 %164
        %167 = vrot.lane.b32.xlu0 %v154, 118
        %v168 = vpop.permute.xlu0 %167
        %171 = vrot.lane.b32.xlu0 %v156, 8
        %v172 = vpop.permute.xlu0 %171
        %174 = vrot.lane.b32.xlu0 %v156, 122
        %v175 = vpop.permute.xlu0 %174
        %178 = vrot.lane.b32.xlu0 %v158, 12
        %v179 = vpop.permute.xlu0 %178
        %181 = vrot.lane.b32.xlu0 %v158, 126
        %v182 = vpop.permute.xlu0 %181
        %184 = vrot.lane.b32.xlu0 %v152, 14
        %v185 = vpop.permute.xlu0 %184
        %187 = vrot.lane.b32.xlu0 %v154, 18
        %v188 = vpop.permute.xlu0 %187
        %190 = vrot.lane.b32.xlu0 %v156, 22
        %v191 = vpop.permute.xlu0 %190
        %193 = vrot.lane.b32.xlu0 %v158, 26
        %v194 = vpop.permute.xlu0 %193
        %vm196 = vcmask 15360
        %v197 = vsel %vm196, %v152, %v161
        %vm198 = vcmask 31744
        %v199 = vsel %vm198, %v197, %v165
        %vm200 = vcmask 48128
        %v201 = vsel %vm200, %v199, %v168
        %vm202 = vcmask 64512
        %v203 = vsel %vm202, %v201, %v172
        %vm204 = vcmask 80896
        %v205 = vsel %vm204, %v203, %v175
        %vm206 = vcmask 97280
        %v207 = vsel %vm206, %v205, %v179
        %vm208 = vcmask 113664
        %v209 = vsel %vm208, %v207, %v182
        %vm210 = vcmask 130048
        %v211 = vsel %vm210, %v209, %v185
        %vm212 = vcmask 146432
        %v213 = vsel %vm212, %v211, %v152
        %vm214 = vcmask 162816
        %v215 = vsel %vm214, %v213, %v188
        %vm216 = vcmask 179200
        %v217 = vsel %vm216, %v215, %v165
        %vm218 = vcmask 195584
        %v219 = vsel %vm218, %v217, %v191
        %vm220 = vcmask 211968
        %v221 = vsel %vm220, %v219, %v172
        %vm222 = vcmask 228352
        %v223 = vsel %vm222, %v221, %v194
        %vm224 = vcmask 244736
        %v225 = vsel %vm224, %v223, %v179
        %226 = vrot.lane.b32.xlu0 %v152, 124
        %v227 = vpop.permute.xlu0 %226
        %229 = vrot.lane.b32.xlu0 %v152, 110
        %v230 = vpop.permute.xlu0 %229
        %232 = vrot.lane.b32.xlu0 %v154, 114
        %v233 = vpop.permute.xlu0 %232
        %235 = vrot.lane.b32.xlu0 %v156, 4
        %v236 = vpop.permute.xlu0 %235
        %238 = vrot.lane.b32.xlu0 %v156, 118
        %v239 = vpop.permute.xlu0 %238
        %241 = vrot.lane.b32.xlu0 %v158, 8
        %v242 = vpop.permute.xlu0 %241
        %244 = vrot.lane.b32.xlu0 %v158, 122
        %v245 = vpop.permute.xlu0 %244
        %247 = vrot.lane.b32.xlu0 %v152, 10
        %v248 = vpop.permute.xlu0 %247
        %250 = vrot.lane.b32.xlu0 %v154, 14
        %v251 = vpop.permute.xlu0 %250
        %253 = vrot.lane.b32.xlu0 %v156, 18
        %v254 = vpop.permute.xlu0 %253
        %256 = vrot.lane.b32.xlu0 %v158, 22
        %v257 = vpop.permute.xlu0 %256
        %v259 = vsel %vm196, %v227, %v230
        %v260 = vsel %vm198, %v259, %v154
        %v261 = vsel %vm200, %v260, %v233
        %v262 = vsel %vm202, %v261, %v236
        %v263 = vsel %vm204, %v262, %v239
        %v264 = vsel %vm206, %v263, %v242
        %v265 = vsel %vm208, %v264, %v245
        %v266 = vsel %vm210, %v265, %v248
        %v267 = vsel %vm212, %v266, %v227
        %v268 = vsel %vm214, %v267, %v251
        %v269 = vsel %vm216, %v268, %v154
        %v270 = vsel %vm218, %v269, %v254
        %v271 = vsel %vm220, %v270, %v236
        %v272 = vsel %vm222, %v271, %v257
        %v273 = vsel %vm224, %v272, %v242
        %274 = vrot.lane.b32.xlu0 %v152, 120
        %v275 = vpop.permute.xlu0 %274
        %277 = vrot.lane.b32.xlu0 %v152, 106
        %v278 = vpop.permute.xlu0 %277
        %280 = vrot.lane.b32.xlu0 %v154, 124
        %v281 = vpop.permute.xlu0 %280
        %283 = vrot.lane.b32.xlu0 %v154, 110
        %v284 = vpop.permute.xlu0 %283
        %286 = vrot.lane.b32.xlu0 %v156, 114
        %v287 = vpop.permute.xlu0 %286
        %289 = vrot.lane.b32.xlu0 %v158, 4
        %v290 = vpop.permute.xlu0 %289
        %292 = vrot.lane.b32.xlu0 %v158, 118
        %v293 = vpop.permute.xlu0 %292
        %295 = vrot.lane.b32.xlu0 %v152, 6
        %v296 = vpop.permute.xlu0 %295
        %298 = vrot.lane.b32.xlu0 %v154, 10
        %v299 = vpop.permute.xlu0 %298
        %301 = vrot.lane.b32.xlu0 %v156, 14
        %v302 = vpop.permute.xlu0 %301
        %304 = vrot.lane.b32.xlu0 %v158, 18
        %v305 = vpop.permute.xlu0 %304
        %v307 = vsel %vm196, %v275, %v278
        %v308 = vsel %vm198, %v307, %v281
        %v309 = vsel %vm200, %v308, %v284
        %v310 = vsel %vm202, %v309, %v156
        %v311 = vsel %vm204, %v310, %v287
        %v312 = vsel %vm206, %v311, %v290
        %v313 = vsel %vm208, %v312, %v293
        %v314 = vsel %vm210, %v313, %v296
        %v315 = vsel %vm212, %v314, %v275
        %v316 = vsel %vm214, %v315, %v299
        %v317 = vsel %vm216, %v316, %v281
        %v318 = vsel %vm218, %v317, %v302
        %v319 = vsel %vm220, %v318, %v156
        %v320 = vsel %vm222, %v319, %v305
        %v321 = vsel %vm224, %v320, %v290
        %322 = vrot.lane.b32.xlu0 %v152, 116
        %v323 = vpop.permute.xlu0 %322
        %325 = vrot.lane.b32.xlu0 %v152, 102
        %v326 = vpop.permute.xlu0 %325
        %328 = vrot.lane.b32.xlu0 %v154, 120
        %v329 = vpop.permute.xlu0 %328
        %331 = vrot.lane.b32.xlu0 %v154, 106
        %v332 = vpop.permute.xlu0 %331
        %334 = vrot.lane.b32.xlu0 %v156, 124
        %v335 = vpop.permute.xlu0 %334
        %337 = vrot.lane.b32.xlu0 %v156, 110
        %v338 = vpop.permute.xlu0 %337
        %340 = vrot.lane.b32.xlu0 %v158, 114
        %v341 = vpop.permute.xlu0 %340
        %343 = vrot.lane.b32.xlu0 %v152, 2
        %v344 = vpop.permute.xlu0 %343
        %346 = vrot.lane.b32.xlu0 %v154, 6
        %v347 = vpop.permute.xlu0 %346
        %349 = vrot.lane.b32.xlu0 %v156, 10
        %v350 = vpop.permute.xlu0 %349
        %352 = vrot.lane.b32.xlu0 %v158, 14
        %v353 = vpop.permute.xlu0 %352
        %v355 = vsel %vm196, %v323, %v326
        %v356 = vsel %vm198, %v355, %v329
        %v357 = vsel %vm200, %v356, %v332
        %v358 = vsel %vm202, %v357, %v335
        %v359 = vsel %vm204, %v358, %v338
        %v360 = vsel %vm206, %v359, %v158
        %v361 = vsel %vm208, %v360, %v341
        %v362 = vsel %vm210, %v361, %v344
        %v363 = vsel %vm212, %v362, %v323
        %v364 = vsel %vm214, %v363, %v347
        %v365 = vsel %vm216, %v364, %v329
        %v366 = vsel %vm218, %v365, %v350
        %v367 = vsel %vm220, %v366, %v335
        %v368 = vsel %vm222, %v367, %v353
        %v369 = vsel %vm224, %v368, %v158
        %371 = vrot.lane.b32.xlu0 %v273, 32
        %v372 = vpop.permute.xlu0 %371
        %375 = vrot.lane.b32.xlu0 %v321, 64
        %v376 = vpop.permute.xlu0 %375
        %379 = vrot.lane.b32.xlu0 %v369, 96
        %v380 = vpop.permute.xlu0 %379
        %vm382 = vcmask 261120
        %v383 = vsel %vm382, %v225, %v372
        %vm384 = vcmask 523264
        %v385 = vsel %vm384, %v383, %v376
        %vm386 = vcmask 785408
        %v387 = vsel %vm386, %v385, %v380
        %388 = vst [vmem:[%s151] sm:$0xff] %v387
        %s389 = sand.u32 %s68, 1
        %s390 = scalar_lea.sflag [#allocation4], %s389
        %s391 = sand.u32 %s68, 1
        %s392 = smul.addr %s391, 8
        %s393 = scalar_lea.vmem [#allocation5], %s392
        // Predicated region
        $region29: #{tpu_custom_call.1} parent=23 // pred_check
          %p394 = pneg %p78
        $region30: #{tpu_custom_call.1} parent=23 // pred_check_branch
          %396 = sbr.rel (%p394) target = $region32
        $region31: #{tpu_custom_call.1} parent=23 // pred_region
          %s398 = ssub.s32 128, 128
          %399 = vsyncadd %s390, %s398
          %s400 = sadd.s32 %s23, %s22
          %s401 = smul.addr %s400, 128
          %s402 = scalar_lea.hbm %s1, %s401
          %s404 = sshll.u32 %s393, 4
          %s405 = int_to_ptr.vmem [resolvable:$true] %s404
          %407 = dma.vmem_to_hbm [thread:$0]  %s405, 128, %s402, %s390
        $region32: #{tpu_custom_call.1} parent=23 // pred_fallthru
          _
      $region24: #{tpu_custom_call.1} parent=5 // pred_fallthru
        _
      %p408 = scmp.le.s32.totalorder 2, %s13
      // Predicated region
      $region33: #{tpu_custom_call.1} parent=5 // pred_check
        %p409 = pneg %p408
      $region34: #{tpu_custom_call.1} parent=5 // pred_check_branch
        %411 = sbr.rel (%p409) target = $region36
      $region35: #{tpu_custom_call.1} parent=5 // pred_region
        %s412 = ssub.s32 %s13, 2
        // Predicated region
        $region37: #{tpu_custom_call.1} parent=35 // pred_check
          %p413 = pneg %p84
        $region38: #{tpu_custom_call.1} parent=35 // pred_check_branch
          %415 = sbr.rel (%p413) target = $region40
        $region39: #{tpu_custom_call.1} parent=35 // pred_region
          %s416 = sand.u32 %s69, 1
          %s417 = scalar_lea.sflag [#allocation4], %s416
          %s418 = sand.u32 %s69, 1
          %s419 = smul.addr %s418, 8
          %s420 = scalar_lea.vmem [#allocation5], %s419
          %421 = dma.done %s417, 128
        $region40: #{tpu_custom_call.1} parent=35 // pred_fallthru
          _
      $region36: #{tpu_custom_call.1} parent=5 // pred_fallthru
        _
    $region6: #{tpu_custom_call.1} parent=1 // loop_footer
      %s17 = sadd.s32 1, %s13
    $region7: #{tpu_custom_call.1} parent=1 // loop_footer_branch
      %12 = sbr.rel target = $region3
    $region8: #{tpu_custom_call.1} parent=1 // loop_exit
      _
    %422 = vsyncpa [#allocation3], 1
    %s423 = scalar_lea.sflag [#allocation3], 1
    %424 = vsyncpa %s423, 1
    %425 = vsyncpa [#allocation4], 1
    %s426 = scalar_lea.sflag [#allocation4], 1
    %427 = vsyncpa %s426, 1

</llo_original>
